<compile_context>
chip_gen: v7x
topology: tpu7x:2x2x1
jax: 0.10.0
libtpu: 0.0.40
codegen_flags: <defaults>
</compile_context>

<pallas_src>
from functools import partial

import numpy as np
import jax
import jax.numpy as jnp
from jax.experimental import pallas as pl
from jax.experimental.pallas import tpu as pltpu


# ----------------------------------------------------------------------------- kernels

def _conv3x3_kernel(*refs, n_in, apply_relu, th, width):
    """Fused 3x3 conv (9 in-kernel taps) + folded BN scale/shift (+ReLU).

    refs = x_refs[0:n_in], w_refs[0:n_in], s_ref, b_ref, o_ref
      x_ref_i: (1, 1, th+2, width+2, Ci)  bf16  halo tile
      w_ref_i: (9, Ci, Cout)              bf16  tap-major weights
      s_ref  : (1, Cout)                  f32   BN scale
      b_ref  : (1, Cout)                  f32   folded bias/shift
      o_ref  : (1, 1, th, width, Cout)
    """
    x_refs = refs[:n_in]
    w_refs = refs[n_in:2 * n_in]
    s_ref, b_ref, o_ref = refs[2 * n_in], refs[2 * n_in + 1], refs[2 * n_in + 2]

    cout = o_ref.shape[-1]
    acc = jnp.zeros((th * width, cout), jnp.float32)

    k = 0
    for dy in range(3):
        for dx in range(3):
            for i in range(n_in):
                ci = x_refs[i].shape[-1]
                patch = x_refs[i][0, 0, dy:dy + th, dx:dx + width, :]
                patch = patch.reshape(th * width, ci)
                acc = acc + jnp.dot(patch, w_refs[i][k],
                                    preferred_element_type=jnp.float32)
            k += 1

    y = acc * s_ref[...] + b_ref[...]
    if apply_relu:
        y = jnp.maximum(y, 0.0)
    o_ref[0, 0] = y.reshape(th, width, cout).astype(o_ref.dtype)


def _upsample_kernel(mh_ref, mwc_ref, x_ref, o_ref):
    """Separable bilinear x2 upsample, one batch element per grid step.

    mh_ref : (Ho, H)           bf16   row-interp matrix
    mwc_ref: (W*C, Wo*C)       bf16   kron(Mw^T, I_C) column-interp matrix
    x_ref  : (1, H, W*C)       bf16
    o_ref  : (1, Ho, Wo*C)
    """
    y1 = jnp.dot(mh_ref[...], x_ref[0], preferred_element_type=jnp.float32)
    y2 = jnp.dot(y1.astype(jnp.bfloat16), mwc_ref[...],
                 preferred_element_type=jnp.float32)
    o_ref[0] = y2.astype(o_ref.dtype)


# ----------------------------------------------------------------------------- wrappers

# Per-pallas_call activation-tile budget (bf16 bytes, per input, before Pallas
# double-buffering). Conservative so 2 inputs x 2 buffers stays well under the
# 32 MiB scoped / 64 MiB physical VMEM of v7x.
_TILE_BUDGET_BYTES = 2 << 20


def _pick_tile_h(H, W, c_total):
    """Largest divisor of H whose halo tile fits the per-input VMEM budget."""
    rows = max(1, _TILE_BUDGET_BYTES // max(1, (W + 2) * c_total * 2))
    th = 1
    for d in range(1, H + 1):
        if H % d == 0 and d <= rows:
            th = d
    return th


def _halo_tiles(xp, th):
    """xp: (N, H+2, W+2, C) -> (N, T, th+2, W+2, C), duplicating 2 halo rows/tile."""
    n, hp2, wp2, c = xp.shape
    h = hp2 - 2
    t = h // th
    if t == 1:
        return xp[:, None]
    return jnp.stack([xp[:, i * th: i * th + th + 2] for i in range(t)], axis=1)


def conv3x3_fused(xs, ws, scale, shift, *, apply_relu, out_dtype=jnp.bfloat16):
    """Fused 3x3 same-padding conv + folded BN + optional ReLU.

    xs : list of (N, H, W, Ci) activations (bf16); passing several inputs is
         equivalent to conv over their channel concatenation (skip connection
         fusion without materializing the concat).
    ws : list of (3, 3, Ci, Cout) weights (the Cin split matching xs).
    scale/shift: (Cout,) per-channel epilogue.
    """
    N, H, W, _ = xs[0].shape
    Cout = ws[0].shape[-1]
    Cs = [int(x.shape[-1]) for x in xs]
    TH = _pick_tile_h(H, W, sum(Cs))
    T = H // TH

    xts = []
    for x in xs:
        xp = jnp.pad(x.astype(jnp.bfloat16), ((0, 0), (1, 1), (1, 1), (0, 0)))
        xts.append(_halo_tiles(xp, TH))                       # (N, T, TH+2, W+2, Ci)
    wms = [w.reshape(9, c, Cout).astype(jnp.bfloat16) for w, c in zip(ws, Cs)]
    s2 = scale.reshape(1, Cout).astype(jnp.float32)
    b2 = shift.reshape(1, Cout).astype(jnp.float32)

    n_in = len(xs)
    kernel = partial(_conv3x3_kernel, n_in=n_in, apply_relu=apply_relu,
                     th=TH, width=W)

    in_specs = (
        [pl.BlockSpec((1, 1, TH + 2, W + 2, c), lambda n, t: (n, t, 0, 0, 0))
         for c in Cs]
        + [pl.BlockSpec((9, c, Cout), lambda n, t: (0, 0, 0)) for c in Cs]
        + [pl.BlockSpec((1, Cout), lambda n, t: (0, 0)),
           pl.BlockSpec((1, Cout), lambda n, t: (0, 0))]
    )

    out = pl.pallas_call(
        kernel,
        out_shape=jax.ShapeDtypeStruct((N, T, TH, W, Cout), out_dtype),
        grid=(N, T),
        in_specs=in_specs,
        out_specs=pl.BlockSpec((1, 1, TH, W, Cout), lambda n, t: (n, t, 0, 0, 0)),
        compiler_params=pltpu.CompilerParams(
            dimension_semantics=("parallel", "parallel")),
    )(*xts, *wms, s2, b2)
    return out.reshape(N, H, W, Cout)


def _bilinear_matrix_1d(n_in, n_out):
    """PyTorch Upsample(mode='bilinear', align_corners=True) 1-D interp matrix."""
    M = np.zeros((n_out, n_in), dtype=np.float32)
    if n_in == 1:
        M[:, 0] = 1.0
        return M
    scale = (n_in - 1) / (n_out - 1)
    for o in range(n_out):
        src = o * scale
        i0 = min(int(np.floor(src)), n_in - 1)
        i1 = min(i0 + 1, n_in - 1)
        f = src - i0
        M[o, i0] += 1.0 - f
        M[o, i1] += f
    return M


def bilinear_upsample_x2(x):
    """x: (N, H, W, C) -> (N, 2H, 2W, C), bilinear, align_corners=True (separable)."""
    N, H, W, C = x.shape
    Ho, Wo = 2 * H, 2 * W
    Mh = jnp.asarray(_bilinear_matrix_1d(H, Ho), jnp.bfloat16)          # (Ho, H)
    Mwc = jnp.asarray(
        np.kron(_bilinear_matrix_1d(W, Wo).T, np.eye(C, dtype=np.float32)),
        jnp.bfloat16)                                                   # (W*C, Wo*C)
    xf = x.astype(jnp.bfloat16).reshape(N, H, W * C)

    out = pl.pallas_call(
        _upsample_kernel,
        out_shape=jax.ShapeDtypeStruct((N, Ho, Wo * C), jnp.bfloat16),
        grid=(N,),
        in_specs=[
            pl.BlockSpec((Ho, H), lambda n: (0, 0)),
            pl.BlockSpec((W * C, Wo * C), lambda n: (0, 0)),
            pl.BlockSpec((1, H, W * C), lambda n: (n, 0, 0)),
        ],
        out_specs=pl.BlockSpec((1, Ho, Wo * C), lambda n: (n, 0, 0)),
        compiler_params=pltpu.CompilerParams(dimension_semantics=("parallel",)),
    )(Mh, Mwc, xf)
    return out.reshape(N, Ho, Wo, C)


# ----------------------------------------------------------------------------- params

_BN_EPS = 1e-5


def _make_conv_bn_params(key, cin, cout, with_bn=True, with_bias=True):
    """Deterministic synthetic params; inference-mode BN folded to (scale, shift)."""
    k = jax.random.split(key, 6)
    w = jax.random.normal(k[0], (3, 3, cin, cout), jnp.float32) * 0.1
    bias = (jax.random.normal(k[1], (cout,), jnp.float32) * 0.1
            if with_bias else jnp.zeros((cout,), jnp.float32))
    if with_bn:
        gamma = 1.0 + 0.1 * jax.random.normal(k[2], (cout,), jnp.float32)
        beta = 0.1 * jax.random.normal(k[3], (cout,), jnp.float32)
        mean = 0.1 * jax.random.normal(k[4], (cout,), jnp.float32)
        var = jnp.abs(jax.random.normal(k[5], (cout,), jnp.float32)) + 0.5
        s = gamma / jnp.sqrt(var + _BN_EPS)
        shift = beta + (bias - mean) * s
    else:
        s = jnp.ones((cout,), jnp.float32)
        shift = bias
    return (w, s, shift)


def make_decoder_params(n0, num_classes, seed=0):
    n1, n2, n3, n4 = n0, 2 * n0, 4 * n0, 8 * n0
    keys = jax.random.split(jax.random.PRNGKey(seed), 7)
    return {
        "conv5_1": _make_conv_bn_params(keys[0], n4 + n3, n3),
        "conv5_2": _make_conv_bn_params(keys[1], n3, n3),
        "conv6_1": _make_conv_bn_params(keys[2], n3 + n2, n2),
        "conv6_2": _make_conv_bn_params(keys[3], n2, n2),
        "conv7_1": _make_conv_bn_params(keys[4], n2 + n1, n1),
        "conv7_2": _make_conv_bn_params(keys[5], n1, n1),
        "conv_pred": _make_conv_bn_params(keys[6], n1, num_classes,
                                          with_bn=False, with_bias=False),
    }


# ----------------------------------------------------------------------------- forward

def decoder_unet_forward(zs_nchw, params):
    """zs_nchw: (conv1_2, conv2_2, conv3_2, conv4_2) in NCHW f32. Returns pred NCHW f32."""
    # NCHW -> NHWC and cast activations to bf16 once at the boundary (glue).
    c1, c2, c3, c4 = [jnp.transpose(z, (0, 2, 3, 1)).astype(jnp.bfloat16)
                      for z in zs_nchw]

    def skip_conv(name, xa, xb):
        # Equivalent to conv over torch.cat([xa, xb], channel) with weight split
        # along Cin -> no HBM concat materialization.
        w, s, b = params[name]
        ca = xa.shape[-1]
        return conv3x3_fused([xa, xb], [w[:, :, :ca, :], w[:, :, ca:, :]],
                             s, b, apply_relu=True)

    def plain_conv(name, x, *, relu=True, out_dtype=jnp.bfloat16):
        w, s, b = params[name]
        return conv3x3_fused([x], [w], s, b, apply_relu=relu, out_dtype=out_dtype)

    d3 = bilinear_upsample_x2(c4)
    x = skip_conv("conv5_1", d3, c3)      # cat([deconv3, conv3_2], 1)
    x = plain_conv("conv5_2", x)

    d2 = bilinear_upsample_x2(x)
    x = skip_conv("conv6_1", d2, c2)
    x = plain_conv("conv6_2", x)

    d1 = bilinear_upsample_x2(x)
    x = skip_conv("conv7_1", d1, c1)
    x = plain_conv("conv7_2", x)

    pred = plain_conv("conv_pred", x, relu=False, out_dtype=jnp.float32)
    return jnp.transpose(pred, (0, 3, 1, 2))           # back to NCHW to match PyTorch


# ----------------------------------------------------------------------------- main

if __name__ == "__main__":
    n0, num_classes = 4, 3
    n1, n2, n3, n4 = n0, 2 * n0, 4 * n0, 8 * n0
    N, H = 2, 16  # full-resolution spatial

    key = jax.random.PRNGKey(0)
    k1, k2, k3, k4 = jax.random.split(key, 4)
    # encoder feature maps (NCHW, as the PyTorch module expects)
    conv1_2 = jax.random.normal(k1, (N, n1, H, H), jnp.float32)
    conv2_2 = jax.random.normal(k2, (N, n2, H // 2, H // 2), jnp.float32)
    conv3_2 = jax.random.normal(k3, (N, n3, H // 4, H // 4), jnp.float32)
    conv4_2 = jax.random.normal(k4, (N, n4, H // 8, H // 8), jnp.float32)

    params = make_decoder_params(n0, num_classes, seed=0)

    pred = decoder_unet_forward((conv1_2, conv2_2, conv3_2, conv4_2), params)
    pred = jax.block_until_ready(pred)

    assert pred.shape == (N, num_classes, H, H), pred.shape
    assert bool(jnp.all(jnp.isfinite(pred)))
    print("KERNEL_OK")
</pallas_src>

<mosaic_0001>
module attributes {stable_mosaic.version = 11 : i64} {
  func.func @_upsample_kernel(%arg0: i32, %arg1: memref<4x2xbf16, #tpu.memory_space<vmem>>, %arg2: memref<64x128xbf16, #tpu.memory_space<vmem>>, %arg3: memref<1x2x64xbf16, #tpu.memory_space<vmem>>, %arg4: memref<1x4x128xbf16, #tpu.memory_space<vmem>>) attributes {dimension_semantics = [#tpu.dimension_semantics<parallel>], iteration_bounds = array<i64: 2>, scalar_prefetch = 0 : i64, scratch_operands = 0 : i64, tpu.core_type = #tpu.core_type<tc>, window_params = [{pipeline_mode = #tpu.pipeline_mode<synchronous>, transform_indices = @transform_0, window_bounds = array<i64: 4, 2>}, {pipeline_mode = #tpu.pipeline_mode<synchronous>, transform_indices = @transform_1, window_bounds = array<i64: 64, 128>}, {transform_indices = @transform_2, window_bounds = array<i64: 1, 2, 64>}, {transform_indices = @transform_3, window_bounds = array<i64: 1, 4, 128>}]} {
    %c0 = arith.constant 0 : index
    %c0_0 = arith.constant 0 : index
    %0 = vector.load %arg1[%c0, %c0_0] : memref<4x2xbf16, #tpu.memory_space<vmem>>, vector<4x2xbf16>
    %c0_1 = arith.constant 0 : index
    %c0_2 = arith.constant 0 : index
    %c0_3 = arith.constant 0 : index
    %1 = vector.load %arg3[%c0_1, %c0_2, %c0_3] : memref<1x2x64xbf16, #tpu.memory_space<vmem>>, vector<1x2x64xbf16>
    %2 = vector.shape_cast %1 : vector<1x2x64xbf16> to vector<2x64xbf16>
    %cst = arith.constant dense<0.000000e+00> : vector<4x64xf32>
    %3 = tpu.matmul %0, %2, %cst {dimension_numbers = #tpu.dot_dimension_numbers<[1], [0], [0], [1], [0, 0, 1, 1], [], []>} : vector<4x2xbf16>, vector<2x64xbf16>, vector<4x64xf32> -> vector<4x64xf32>
    %4 = arith.truncf %3 : vector<4x64xf32> to vector<4x64xbf16>
    %c0_4 = arith.constant 0 : index
    %c0_5 = arith.constant 0 : index
    %5 = vector.load %arg2[%c0_4, %c0_5] : memref<64x128xbf16, #tpu.memory_space<vmem>>, vector<64x128xbf16>
    %cst_6 = arith.constant dense<0.000000e+00> : vector<4x128xf32>
    %6 = tpu.matmul %4, %5, %cst_6 {dimension_numbers = #tpu.dot_dimension_numbers<[1], [0], [0], [1], [0, 0, 1, 1], [], []>} : vector<4x64xbf16>, vector<64x128xbf16>, vector<4x128xf32> -> vector<4x128xf32>
    %7 = arith.truncf %6 : vector<4x128xf32> to vector<4x128xbf16>
    %c0_7 = arith.constant 0 : index
    %c0_8 = arith.constant 0 : index
    %c0_9 = arith.constant 0 : index
    %8 = vector.load %arg4[%c0_7, %c0_8, %c0_9] : memref<1x4x128xbf16, #tpu.memory_space<vmem>>, vector<1x4x128xbf16>
    %9 = vector.shape_cast %8 : vector<1x4x128xbf16> to vector<4x128xbf16>
    %10 = vector.shape_cast %7 : vector<4x128xbf16> to vector<1x4x128xbf16>
    tpu.vector_store %arg4[%c0_7, %c0_8, %c0_9], %10 {strides = array<i32>} : memref<1x4x128xbf16, #tpu.memory_space<vmem>>, vector<1x4x128xbf16>,
    return
  }
  func.func @transform_0(%arg0: i32) -> (i32, i32) {
    %c0_i32 = arith.constant 0 : i32
    %c0_i32_0 = arith.constant 0 : i32
    %c0_i32_1 = arith.constant 0 : i32
    return %c0_i32, %c0_i32_0 : i32, i32
  }
  func.func @transform_1(%arg0: i32) -> (i32, i32) {
    %c0_i32 = arith.constant 0 : i32
    %c0_i32_0 = arith.constant 0 : i32
    %c0_i32_1 = arith.constant 0 : i32
    return %c0_i32, %c0_i32_0 : i32, i32
  }
  func.func @transform_2(%arg0: i32) -> (i32, i32, i32) {
    %c0_i32 = arith.constant 0 : i32
    %c0_i32_0 = arith.constant 0 : i32
    %c0_i32_1 = arith.constant 0 : i32
    return %arg0, %c0_i32, %c0_i32_0 : i32, i32, i32
  }
  func.func @transform_3(%arg0: i32) -> (i32, i32, i32) {
    %c0_i32 = arith.constant 0 : i32
    %c0_i32_0 = arith.constant 0 : i32
    %c0_i32_1 = arith.constant 0 : i32
    return %arg0, %c0_i32, %c0_i32_0 : i32, i32, i32
  }
}

</mosaic_0001>

<llo_original>
// kernel: tpu_custom_call.1
$region0: #{tpu_custom_call.1}
  #allocation0 [shape = 'u32[]', space=smem, size = 0x4, offset = 0x4, fixed_abs, tag = 'smem constant byte address 0x4 - core index']
  #allocation1 [shape = 'u32[144,128]{1,0:T(1,128)}', space=vmem, size = 0x12000, scoped, tag = 'internal scratch']
  %s0 = inlined_call_operand.vmem [shape: bf16[4,2], index: 0, kind: input, shape index: {}]
  %s1 = inlined_call_operand.hbm [shape: bf16[64,128], index: 1, kind: input, shape index: {}]
  %s2 = inlined_call_operand.vmem [shape: bf16[2,2,64], index: 2, kind: input, shape index: {}]
  %s3 = inlined_call_operand.hbm [shape: bf16[2,4,128], index: 3, kind: output, shape index: {}]
  %s4 = sld [smem:[#allocation0]]
  $region49: #{tpu_custom_call.1} parent=0
    _
  %s6 = ssub.s32 1, %s4
  %s7 = scalar_select 0, %s6, %s4
  $region1: #{tpu_custom_call.1} parent=0
    #allocation2 [shape = 'u8[16384]{0}', space=vmem, size = 0x4000, scoped, tag = 'input window, operand 1, single buffered']
    #allocation3 [shape = 's32[2]{0}', space=sflag, size = 0x8, scoped, tag = 'scoped memory for tpu_custom_call.1']
    #allocation4 [shape = 's32[2]{0}', space=sflag, size = 0x8, scoped, tag = 'scoped memory for tpu_custom_call.1']
    #allocation5 [shape = 'u8[2048]{0}', space=vmem, size = 0x800, scoped, tag = 'output window, operand 0']
    %8 = vsyncpa [#allocation3], 0
    %9 = vsyncpa [#allocation4], 0
    %s10 = scalar_lea.sflag [#allocation4], 1
    %11 = vsyncpa %s10, 0
    loop: start=0, step=1, limit=4
    $region2: #{tpu_custom_call.1} parent=1 // loop_pre_header
      _
    $region3: #{tpu_custom_call.1} parent=1 // loop_header
      %s13 = sphi 0, %s17
      %p14 = scmp.ge.s32.totalorder %s13, 4
      %s21 = sphi 0, %s21
      %s23 = sphi 0, %s21
      %s24 = sphi 0, %s23
      %s38 = sphi 0, %s24
      %s42 = sphi 0, %s42
      %s44 = sphi 0, %s42
      %s45 = sphi 0, %s44
      %s59 = sphi 0, %s45
      %s65 = sphi 0, %s67
      %s68 = sphi 0, %s65
      %s69 = sphi 0, %s68
      %s85 = sphi 0, %s69
      %s91 = sphi 0, %s93
      %s94 = sphi 0, %s91
      %s95 = sphi 0, %s94
      %s111 = sphi 0, %s95
    $region4: #{tpu_custom_call.1} parent=1 // loop_header_branch
      %16 = sbr.rel (%p14) target = $region8
    $region5: #{tpu_custom_call.1} parent=1 // loop_body
      %s18 = ssub.s32 %s13, 1
      %s19 = ssub.s32 %s13, 2
      %s20 = sadd.s32 %s13, 1
      %s22 = sadd.s32 %s21, 1
      %p25 = scmp.eq.s32.totalorder %s13, 1
      %p26 = scmp.ne.s32.totalorder %s21, %s23
      %p27 = scmp.eq.s32.totalorder %s13, 0
      %p28 = por %p26, %p27
      %p29 = scmp.ne.s32.totalorder %s21, %s23
      %p30 = scmp.eq.s32.totalorder %s18, 1
      %p31 = por %p29, %p30
      %p32 = scmp.ne.s32.totalorder %s23, %s24
      %p33 = scmp.eq.s32.totalorder %s18, 0
      %p34 = por %p32, %p33
      %p35 = scmp.ne.s32.totalorder %s23, %s24
      %p36 = scmp.eq.s32.totalorder %s19, 1
      %p37 = por %p35, %p36
      %p39 = scmp.ne.s32.totalorder %s24, %s38
      %p40 = scmp.eq.s32.totalorder %s19, 0
      %p41 = por %p39, %p40
      %s43 = sadd.s32 %s42, 1
      %p46 = scmp.eq.s32.totalorder %s13, 1
      %p47 = scmp.ne.s32.totalorder %s42, %s44
      %p48 = scmp.eq.s32.totalorder %s13, 0
      %p49 = por %p47, %p48
      %p50 = scmp.ne.s32.totalorder %s42, %s44
      %p51 = scmp.eq.s32.totalorder %s18, 1
      %p52 = por %p50, %p51
      %p53 = scmp.ne.s32.totalorder %s44, %s45
      %p54 = scmp.eq.s32.totalorder %s18, 0
      %p55 = por %p53, %p54
      %p56 = scmp.ne.s32.totalorder %s44, %s45
      %p57 = scmp.eq.s32.totalorder %s19, 1
      %p58 = por %p56, %p57
      %p60 = scmp.ne.s32.totalorder %s45, %s59
      %p61 = scmp.eq.s32.totalorder %s19, 0
      %p62 = por %p60, %p61
      %s63 = ssub.s32 %s13, %s20
      %p64 = scmp.eq.s32.totalorder %s63, 0
      %s66 = sadd.s32 %s65, 1
      %s67 = scalar_select %p64, %s65, %s66
      %p70 = pneg %p64
      %p71 = scmp.eq.s32.totalorder %s13, 1
      %p72 = por %p70, %p71
      %p73 = scmp.ne.s32.totalorder %s65, %s68
      %p74 = scmp.eq.s32.totalorder %s13, 0
      %p75 = por %p73, %p74
      %p76 = scmp.ne.s32.totalorder %s65, %s68
      %p77 = scmp.eq.s32.totalorder %s18, 1
      %p78 = por %p76, %p77
      %p79 = scmp.ne.s32.totalorder %s68, %s69
      %p80 = scmp.eq.s32.totalorder %s18, 0
      %p81 = por %p79, %p80
      %p82 = scmp.ne.s32.totalorder %s68, %s69
      %p83 = scmp.eq.s32.totalorder %s19, 1
      %p84 = por %p82, %p83
      %p86 = scmp.ne.s32.totalorder %s69, %s85
      %p87 = scmp.eq.s32.totalorder %s19, 0
      %p88 = por %p86, %p87
      %s89 = ssub.s32 %s13, %s20
      %p90 = scmp.eq.s32.totalorder %s89, 0
      %s92 = sadd.s32 %s91, 1
      %s93 = scalar_select %p90, %s91, %s92
      %p96 = pneg %p90
      %p97 = scmp.eq.s32.totalorder %s13, 1
      %p98 = por %p96, %p97
      %p99 = scmp.ne.s32.totalorder %s91, %s94
      %p100 = scmp.eq.s32.totalorder %s13, 0
      %p101 = por %p99, %p100
      %p102 = scmp.ne.s32.totalorder %s91, %s94
      %p103 = scmp.eq.s32.totalorder %s18, 1
      %p104 = por %p102, %p103
      %p105 = scmp.ne.s32.totalorder %s94, %s95
      %p106 = scmp.eq.s32.totalorder %s18, 0
      %p107 = por %p105, %p106
      %p108 = scmp.ne.s32.totalorder %s94, %s95
      %p109 = scmp.eq.s32.totalorder %s19, 1
      %p110 = por %p108, %p109
      %p112 = scmp.ne.s32.totalorder %s95, %s111
      %p113 = scmp.eq.s32.totalorder %s19, 0
      %p114 = por %p112, %p113
      %p115 = scmp.le.s32.totalorder 1, %s13
      %p116 = scmp.lt.s32.totalorder %s13, 3
      %p117 = pnand %p115, %p116
      %p118 = pneg %p117
      // Predicated region
      $region9: #{tpu_custom_call.1} parent=5 // pred_check
        _
      $region10: #{tpu_custom_call.1} parent=5 // pred_check_branch
        %120 = sbr.rel (%p117) target = $region12
      $region11: #{tpu_custom_call.1} parent=5 // pred_region
        %s121 = ssub.s32 %s13, 1
        // Predicated region
        $region13: #{tpu_custom_call.1} parent=11 // pred_check
          %p122 = pneg %p34
        $region14: #{tpu_custom_call.1} parent=11 // pred_check_branch
          %124 = sbr.rel (%p122) target = $region16
        $region15: #{tpu_custom_call.1} parent=11 // pred_region
          _
        $region16: #{tpu_custom_call.1} parent=11 // pred_fallthru
          _
        // Predicated region
        $region17: #{tpu_custom_call.1} parent=11 // pred_check
          %p125 = pneg %p55
        $region18: #{tpu_custom_call.1} parent=11 // pred_check_branch
          %127 = sbr.rel (%p125) target = $region20
        $region19: #{tpu_custom_call.1} parent=11 // pred_region
          %s129 = ssub.s32 512, 512
          %130 = vsyncadd [#allocation3], %s129
          %s131 = sshll.u32 [#allocation2], 4
          %s132 = int_to_ptr.vmem [resolvable:$true] %s131
          %137 = dma.hbm_to_vmem [thread:$0]  %s1, 512, %s132, [#allocation3], 64, 64, 4
        $region20: #{tpu_custom_call.1} parent=11 // pred_fallthru
          _
      $region12: #{tpu_custom_call.1} parent=5 // pred_fallthru
        _
      %p138 = scmp.lt.s32.totalorder %s13, 2
      // Predicated region
      $region21: #{tpu_custom_call.1} parent=5 // pred_check
        %p139 = pneg %p138
      $region22: #{tpu_custom_call.1} parent=5 // pred_check_branch
        %141 = sbr.rel (%p139) target = $region24
      $region23: #{tpu_custom_call.1} parent=5 // pred_region
        // Predicated region
        $region25: #{tpu_custom_call.1} parent=23 // pred_check
          %p142 = pneg %p75
        $region26: #{tpu_custom_call.1} parent=23 // pred_check_branch
          %144 = sbr.rel (%p142) target = $region28
        $region27: #{tpu_custom_call.1} parent=23 // pred_region
          %p145 = scmp.lt.s32.totalorder %s13, 1
          %s146 = scalar_select %p145, %s13, 1
          %s147 = scalar_lea.vmem %s2, %s146
        $region28: #{tpu_custom_call.1} parent=23 // pred_fallthru
          _
      $region24: #{tpu_custom_call.1} parent=5 // pred_fallthru
        _
      %p148 = scmp.le.s32.totalorder 1, %s13
      %p149 = scmp.lt.s32.totalorder %s13, 3
      %p150 = pnand %p148, %p149
      %p151 = pneg %p150
      // Predicated region
      $region29: #{tpu_custom_call.1} parent=5 // pred_check
        _
      $region30: #{tpu_custom_call.1} parent=5 // pred_check_branch
        %153 = sbr.rel (%p150) target = $region32
      $region31: #{tpu_custom_call.1} parent=5 // pred_region
        %s154 = ssub.s32 %s13, 1
        // Predicated region
        $region33: #{tpu_custom_call.1} parent=31 // pred_check
          %p155 = pneg %p55
        $region34: #{tpu_custom_call.1} parent=31 // pred_check_branch
          %157 = sbr.rel (%p155) target = $region36
        $region35: #{tpu_custom_call.1} parent=31 // pred_region
          %158 = dma.done [#allocation3], 512
        $region36: #{tpu_custom_call.1} parent=31 // pred_fallthru
          _
        %p159 = pneg %p34
        %p160 = pneg %p31
        %p161 = pneg %p55
        %p162 = pneg %p52
        %p163 = scmp.lt.s32.totalorder %s18, 1
        %s164 = scalar_select %p163, %s18, 1
        %s165 = scalar_lea.vmem %s2, %s164
        %p166 = pneg %p81
        %p167 = pneg %p78
        %p168 = pneg %p107
        %p169 = pneg %p104
        %s170 = sand.u32 %s94, 1
        %s171 = scalar_lea.sflag [#allocation4], %s170
        %s172 = sand.u32 %s94, 1
        %s173 = smul.addr %s172, 2
        %s174 = scalar_lea.vmem [#allocation5], %s173
        %p175 = scmp.lt.s32.totalorder %s18, 1
        %s176 = scalar_select %p175, %s18, 1
        %s177 = scalar_lea.vmem %s2, %s176
        %v179 = vld [vmem:[%s0] sm:$0x3]
        %v180 = vld [vmem:[%s177] sm:$0x1]
        %vm181 = vcmask 15360
        %v183 = vsel %vm181, %v179, 0
        %vm185 = vcmask 1040384
        %v187 = vsel %vm185, %v180, 0
        %189 = vmatprep.subr.bf16.mxu0 0
        %190 = vmatpush1.bf16.msra.mxu0 %v187
        %191 = vmatprep.subr.bf16.mxu0 0
        %192 = vmatpush1.bf16.msra.mxu0 0
        %193 = vmatprep.subr.bf16.mxu0 0
        %194 = vmatpush1.bf16.msra.mxu0 0
        %195 = vmatprep.subr.bf16.mxu0 0
        %196 = vmatpush1.bf16.msra.mxu0 0
        %197 = vmatprep.subr.bf16.mxu0 0
        %198 = vmatpush1.bf16.msra.mxu0 0
        %199 = vmatprep.subr.bf16.mxu0 0
        %200 = vmatpush1.bf16.msra.mxu0 0
        %201 = vmatprep.subr.bf16.mxu0 0
        %202 = vmatpush1.bf16.msra.mxu0 0
        %203 = vmatprep.subr.bf16.mxu0 0
        %204 = vmatpush1.bf16.msra.mxu0 0
        %205 = vmatprep.subr.bf16.mxu0 0
        %206 = vmatpush1.bf16.msra.mxu0 0
        %207 = vmatprep.subr.bf16.mxu0 0
        %208 = vmatpush1.bf16.msra.mxu0 0
        %209 = vmatprep.subr.bf16.mxu0 0
        %210 = vmatpush1.bf16.msra.mxu0 0
        %211 = vmatprep.subr.bf16.mxu0 0
        %212 = vmatpush1.bf16.msra.mxu0 0
        %213 = vmatprep.subr.bf16.mxu0 0
        %214 = vmatpush1.bf16.msra.mxu0 0
        %215 = vmatprep.subr.bf16.mxu0 0
        %216 = vmatpush1.bf16.msra.mxu0 0
        %217 = vmatprep.subr.bf16.mxu0 0
        %218 = vmatpush1.bf16.msra.mxu0 0
        %219 = vmatprep.subr.bf16.mxu0 0
        %220 = vmatpush1.bf16.msra.mxu0 0
        %221 = vmatprep.mubr.bf16.mxu0 0
        %222 = vmatmul.mubr.bf16.gmra.mrb[0].mxu0 %v183
        %v223 = vpop.f32.mrb[0].mxu0
        %v224 = vadd.f32 0.0, %v223
        %v225 = vpop.f32.mrb[0].mxu0
        %v226 = vpop.f32.mrb[0].mxu0
        %v227 = vpop.f32.mrb[0].mxu0
        %228 = vdwg.mxu0
        %v229 = vpack.c.bf16 %v224, %v224
        %v230 = vld [vmem:[#allocation2] sm:$0xf]
        %v231 = vld [vmem:[#allocation2 + $0x4] sm:$0xf]
        %v232 = vld [vmem:[#allocation2 + $0x8] sm:$0xf]
        %v233 = vld [vmem:[#allocation2 + $0xc] sm:$0xf]
        %v234 = vld [vmem:[#allocation2 + $0x10] sm:$0xf]
        %v235 = vld [vmem:[#allocation2 + $0x14] sm:$0xf]
        %v236 = vld [vmem:[#allocation2 + $0x18] sm:$0xf]
        %v237 = vld [vmem:[#allocation2 + $0x1c] sm:$0xf]
        %v246 = vunpack.c.l.b16 %v230
        %v247 = vunpack.c.l.b16 %v231
        %v248 = vunpack.c.l.b16 %v232
        %v249 = vunpack.c.l.b16 %v233
        %v250 = vunpack.c.l.b16 %v234
        %v251 = vunpack.c.l.b16 %v235
        %v252 = vunpack.c.l.b16 %v236
        %v253 = vunpack.c.l.b16 %v237
        %v254 = vpack.c.b16 %v247, %v246
        %v255 = vpack.c.b16 %v249, %v248
        %v256 = vpack.c.b16 %v251, %v250
        %v257 = vpack.c.b16 %v253, %v252
        %vm262 = vcmask 523264
        %v264 = vsel %vm262, %v229, 0
        %266 = vmatprep.subr.bf16.mxu0 0
        %267 = vmatpush1.bf16.msra.mxu0 %v254
        %268 = vmatprep.subr.bf16.mxu0 0
        %269 = vmatpush1.bf16.msra.mxu0 %v255
        %270 = vmatprep.subr.bf16.mxu0 0
        %271 = vmatpush1.bf16.msra.mxu0 %v256
        %272 = vmatprep.subr.bf16.mxu0 0
        %273 = vmatpush1.bf16.msra.mxu0 %v257
        %274 = vmatprep.subr.bf16.mxu0 0
        %275 = vmatpush1.bf16.msra.mxu0 0
        %276 = vmatprep.subr.bf16.mxu0 0
        %277 = vmatpush1.bf16.msra.mxu0 0
        %278 = vmatprep.subr.bf16.mxu0 0
        %279 = vmatpush1.bf16.msra.mxu0 0
        %280 = vmatprep.subr.bf16.mxu0 0
        %281 = vmatpush1.bf16.msra.mxu0 0
        %282 = vmatprep.subr.bf16.mxu0 0
        %283 = vmatpush1.bf16.msra.mxu0 0
        %284 = vmatprep.subr.bf16.mxu0 0
        %285 = vmatpush1.bf16.msra.mxu0 0
        %286 = vmatprep.subr.bf16.mxu0 0
        %287 = vmatpush1.bf16.msra.mxu0 0
        %288 = vmatprep.subr.bf16.mxu0 0
        %289 = vmatpush1.bf16.msra.mxu0 0
        %290 = vmatprep.subr.bf16.mxu0 0
        %291 = vmatpush1.bf16.msra.mxu0 0
        %292 = vmatprep.subr.bf16.mxu0 0
        %293 = vmatpush1.bf16.msra.mxu0 0
        %294 = vmatprep.subr.bf16.mxu0 0
        %295 = vmatpush1.bf16.msra.mxu0 0
        %296 = vmatprep.subr.bf16.mxu0 0
        %297 = vmatpush1.bf16.msra.mxu0 0
        %298 = vmatprep.mubr.bf16.mxu0 0
        %299 = vmatmul.mubr.bf16.gmra.mrb[0].mxu0 %v264
        %v300 = vpop.f32.mrb[0].mxu0
        %v301 = vadd.f32 0.0, %v300
        %v302 = vpop.f32.mrb[0].mxu0
        %v303 = vpop.f32.mrb[0].mxu0
        %v304 = vpop.f32.mrb[0].mxu0
        %305 = vdwg.mxu0
        %v306 = vpack.c.bf16 %v301, %v301
        %307 = vst [vmem:[%s174] sm:$0x3] %v306
        %s308 = sand.u32 %s94, 1
        %s309 = scalar_lea.sflag [#allocation4], %s308
        %s310 = sand.u32 %s94, 1
        %s311 = smul.addr %s310, 2
        %s312 = scalar_lea.vmem [#allocation5], %s311
        // Predicated region
        $region37: #{tpu_custom_call.1} parent=31 // pred_check
          %p313 = pneg %p104
        $region38: #{tpu_custom_call.1} parent=31 // pred_check_branch
          %315 = sbr.rel (%p313) target = $region40
        $region39: #{tpu_custom_call.1} parent=31 // pred_region
          %s317 = ssub.s32 32, 32
          %318 = vsyncadd %s309, %s317
          %s319 = smul.addr %s18, 32
          %s320 = scalar_lea.hbm %s3, %s319
          %s322 = sshll.u32 %s312, 4
          %s323 = int_to_ptr.vmem [resolvable:$true] %s322
          %325 = dma.vmem_to_hbm [thread:$0]  %s323, 32, %s320, %s309
        $region40: #{tpu_custom_call.1} parent=31 // pred_fallthru
          _
      $region32: #{tpu_custom_call.1} parent=5 // pred_fallthru
        _
      %p326 = scmp.le.s32.totalorder 2, %s13
      // Predicated region
      $region41: #{tpu_custom_call.1} parent=5 // pred_check
        %p327 = pneg %p326
      $region42: #{tpu_custom_call.1} parent=5 // pred_check_branch
        %329 = sbr.rel (%p327) target = $region44
      $region43: #{tpu_custom_call.1} parent=5 // pred_region
        %s330 = ssub.s32 %s13, 2
        // Predicated region
        $region45: #{tpu_custom_call.1} parent=43 // pred_check
          %p331 = pneg %p110
        $region46: #{tpu_custom_call.1} parent=43 // pred_check_branch
          %333 = sbr.rel (%p331) target = $region48
        $region47: #{tpu_custom_call.1} parent=43 // pred_region
          %s334 = sand.u32 %s95, 1
          %s335 = scalar_lea.sflag [#allocation4], %s334
          %s336 = sand.u32 %s95, 1
          %s337 = smul.addr %s336, 2
          %s338 = scalar_lea.vmem [#allocation5], %s337
          %339 = dma.done %s335, 32
        $region48: #{tpu_custom_call.1} parent=43 // pred_fallthru
          _
      $region44: #{tpu_custom_call.1} parent=5 // pred_fallthru
        _
    $region6: #{tpu_custom_call.1} parent=1 // loop_footer
      %s17 = sadd.s32 1, %s13
    $region7: #{tpu_custom_call.1} parent=1 // loop_footer_branch
      %12 = sbr.rel target = $region3
    $region8: #{tpu_custom_call.1} parent=1 // loop_exit
      _
    %340 = vsyncpa [#allocation3], 1
    %s341 = scalar_lea.sflag [#allocation3], 1
    %342 = vsyncpa %s341, 1
    %343 = vsyncpa [#allocation4], 1
    %s344 = scalar_lea.sflag [#allocation4], 1
    %345 = vsyncpa %s344, 1

</llo_original>
